<compile_context>
chip_gen: v7x
topology: tpu7x:2x2x1
jax: 0.10.0
libtpu: 0.0.40
codegen_flags: <defaults>
</compile_context>

<pallas_src>
import functools

import jax
import jax.numpy as jnp
from jax.experimental import pallas as pl
from jax.experimental.pallas import tpu as pltpu


# ----------------------------------------------------------------------------- kernels


def _scores(x_ref, a_ref, off_ref, compute_dtype):
    """(ts, Din) @ (Din, nk_pad) + (1, nk_pad) -> (ts, nk_pad) f32 scores.

    score == squared distance to each (padded) center minus the per-row constant ||c||^2,
    which leaves both argmin over k and softmax over k unchanged. Padded clusters carry a
    +inf offset so they never win the argmin and contribute exp(-inf) = 0 to the softmax.
    """
    x = x_ref[...]
    if x.dtype != compute_dtype:
        x = x.astype(compute_dtype)          # in-kernel cast: no extra HBM pass over `data`
    return jnp.dot(x, a_ref[...], preferred_element_type=jnp.float32) + off_ref[...]


def _onehot_kernel(x_ref, a_ref, off_ref, out_ref, *, compute_dtype):
    d = _scores(x_ref, a_ref, off_ref, compute_dtype)
    ts, nkp = d.shape
    min_d = jnp.min(d, axis=-1, keepdims=True)
    kiota = jax.lax.broadcasted_iota(jnp.int32, (ts, nkp), 1)
    idx = jnp.min(jnp.where(d == min_d, kiota, nkp), axis=-1, keepdims=True)  # first-index argmin
    out_ref[...] = (kiota == idx).astype(jnp.int8)       # int8 writeback: 4x less HBM than int32


def _softmax_kernel(x_ref, a_ref, off_ref, out_ref, *, compute_dtype):
    d = _scores(x_ref, a_ref, off_ref, compute_dtype)
    z = -d
    z = z - jnp.max(z, axis=-1, keepdims=True)
    # exp in compute_dtype: bf16 halves the single-slot EUP cost on v6e/v7x
    # (on v5e use compute_dtype=f32 — its EUP has no bf16 path).
    e = jnp.exp(z.astype(compute_dtype)).astype(jnp.float32)
    denom = jnp.sum(e, axis=-1, keepdims=True)
    out_ref[...] = (e * pl.reciprocal(denom, approx=True)).astype(out_ref.dtype)


def _int_kernel(x_ref, at_ref, offc_ref, out_ref, *, compute_dtype):
    """Lane-dense argmin: scores are computed transposed (nk_pad, ts) so the k reduction runs
    over sublanes and the resulting index row is lane-major; the store is an unmasked vst."""
    x = x_ref[...]
    if x.dtype != compute_dtype:
        x = x.astype(compute_dtype)
    y = jax.lax.dot_general(at_ref[...], x,
                            dimension_numbers=(((1,), (1,)), ((), ())),
                            preferred_element_type=jnp.float32)      # (nk_pad, ts)
    d = y + offc_ref[...]                                            # + (nk_pad, 1) lane-bcast
    nkp, ts = d.shape
    min_d = jnp.min(d, axis=0, keepdims=True)                        # (1, ts) sublane reduction
    kiota = jax.lax.broadcasted_iota(jnp.int32, (nkp, ts), 0)
    idx = jnp.min(jnp.where(d == min_d, kiota, nkp), axis=0, keepdims=True)
    out_ref[0] = idx                                                 # (1, ts) lane-dense int32


# ----------------------------------------------------------------------------- tiling


def _choose_row_tile(rows, row_bytes, budget_bytes):
    """Rows of x per grid step.

    Multiple of 128 (lane-dense int-path rows; (8,128)/(32,128)-tileable blocks), as large as
    the generation-aware VMEM budget allows (amortizes the ~0.35 us/step grid overhead; the old
    2048-row cap is gone), but keeping >= 2 programs when there is enough work so megacore /
    dual-TensorCore sharding has something to split.
    """
    if rows <= 128:
        return rows
    cap = (budget_bytes // max(row_bytes, 1)) // 128 * 128
    cap = max(cap, 128)
    cap = min(cap, max(128, ((rows - 1) // 128) * 128))   # ensure at least two grid steps
    for t in range(cap, 127, -128):                       # prefer a tile that divides rows
        if rows % t == 0:
            return t
    return cap                                            # ragged tail handled by masked writeback


# ----------------------------------------------------------------------------- wrapper


def model_cluster_combined(data, w, b, centers, nk, out_format,
                           compute_dtype=jnp.float32, softmax_out_dtype=jnp.float32):
    if out_format not in ('oneHot', 'int', 'softmax'):
        raise ValueError(f'Invalid output format {out_format}')
    B, S, Din = data.shape
    rows = B * S

    # ---- Collapse the linear feature maker into the cluster head (tiny, outside the kernel). --
    w32 = w.astype(jnp.float32)
    b32 = b.astype(jnp.float32)
    mu32 = centers.astype(jnp.float32)
    a_mat = (-2.0) * jnp.dot(w32, mu32.T)                                     # (Din, nk)
    offset = (jnp.sum(mu32 * mu32, axis=-1)[None, :]
              - 2.0 * jnp.dot(b32, mu32.T))                                   # (1, nk) f32

    # ---- Pad nk to a lane multiple: zero A columns, +inf offset (padded clusters never win
    #      the argmin and contribute exp(-inf) = 0 to the softmax). ----
    nk_pad = max(128, ((nk + 127) // 128) * 128)
    if nk_pad != nk:
        a_mat = jnp.pad(a_mat, ((0, 0), (0, nk_pad - nk)))
        offset = jnp.pad(offset, ((0, 0), (0, nk_pad - nk)), constant_values=jnp.inf)

    a_mat = a_mat.astype(compute_dtype)     # bf16 MXU operands (all generations) if requested
    offset = offset.astype(jnp.float32)     # epilogue add stays f32

    # Big input stays in its native dtype (a wrapper-side cast would cost one extra full HBM
    # read+write pass); flatten (B, S, Din) -> (B*S, Din) so one grid axis spans batch
    # boundaries — a free, contiguous reshape.
    x = data.reshape(rows, Din)

    in_elt = jnp.dtype(data.dtype).itemsize
    a_elt = jnp.dtype(compute_dtype).itemsize
    if out_format == 'oneHot':
        out_cols, out_elt = nk_pad, 1                                          # int8
    elif out_format == 'softmax':
        out_cols, out_elt = nk_pad, jnp.dtype(softmax_out_dtype).itemsize
    else:
        out_cols, out_elt = 1, 4                                               # int32 per row

    # Per-row VMEM: double-buffered in/out tiles + ~3x (ts, nk_pad) f32 intermediates
    # (score, exp / one-hot temporaries) held in compiler-managed scratch.
    row_bytes = 2 * (Din * in_elt + out_cols * out_elt) + 3 * nk_pad * 4

    # ---- Generation-aware VMEM budgeting. ----
    try:
        vmem_cap = pltpu.get_tpu_info().vmem_capacity_bytes
    except Exception:
        vmem_cap = 64 << 20                   # conservative (v7x-sized) fallback
    if vmem_cap >= (96 << 20):                # v5e / v6e: 128 MiB physical VMEM
        tile_budget, vmem_ceiling = 80 << 20, 110 << 20
    else:                                     # v7x: 64 MiB physical VMEM
        tile_budget, vmem_ceiling = 22 << 20, 48 << 20

    # Resident constants (A + offsets, default double-buffered; small after the collapse).
    const_bytes = 2 * (Din * nk_pad * a_elt + 2 * nk_pad * 4)
    ts = _choose_row_tile(rows, row_bytes, max(tile_budget - const_bytes, 4 << 20))
    n_tiles = pl.cdiv(rows, ts)

    vmem_limit = int(min(max(ts * row_bytes + const_bytes + (4 << 20), 16 << 20), vmem_ceiling))
    cp = pltpu.CompilerParams(dimension_semantics=("parallel",),
                              vmem_limit_bytes=vmem_limit)

    if out_format == 'int':
        out = pl.pallas_call(
            functools.partial(_int_kernel, compute_dtype=compute_dtype),
            out_shape=jax.ShapeDtypeStruct((n_tiles, 1, ts), jnp.int32),
            grid=(n_tiles,),
            in_specs=[pl.BlockSpec((ts, Din), lambda i: (i, 0)),
                      pl.BlockSpec((nk_pad, Din), lambda i: (0, 0)),   # A^T (resident)
                      pl.BlockSpec((nk_pad, 1), lambda i: (0, 0))],    # offset column
            out_specs=pl.BlockSpec((1, 1, ts), lambda i: (i, 0, 0)),   # lane-dense index rows
            compiler_params=cp,
        )(x, a_mat.T, offset.T)
        # (n_tiles, ts) slab back to (B, S); rows of a ragged tail (if any) are dropped.
        return out.reshape(n_tiles * ts)[:rows].reshape(B, S)

    kernel = _onehot_kernel if out_format == 'oneHot' else _softmax_kernel
    out_dtype = jnp.int8 if out_format == 'oneHot' else softmax_out_dtype
    out = pl.pallas_call(
        functools.partial(kernel, compute_dtype=compute_dtype),
        out_shape=jax.ShapeDtypeStruct((rows, nk_pad), out_dtype),
        grid=(n_tiles,),
        in_specs=[pl.BlockSpec((ts, Din), lambda i: (i, 0)),
                  pl.BlockSpec((Din, nk_pad), lambda i: (0, 0)),       # A (resident)
                  pl.BlockSpec((1, nk_pad), lambda i: (0, 0))],        # offset row
        out_specs=pl.BlockSpec((ts, nk_pad), lambda i: (i, 0)),
        compiler_params=cp,
    )(x, a_mat, offset)
    # Drop the lane padding (no-op when nk is already a multiple of 128) and restore (B, S, nk).
    return out[:, :nk].reshape(B, S, nk)


# ----------------------------------------------------------------------------- reference / test


def _reference(data, w, b, centers, nk, out_format):
    c = jnp.einsum('bsd,dh->bsh', data, w) + b[0]
    d = jnp.sum((c[:, :, None, :] - centers[None, None, :, :]) ** 2, axis=-1)
    if out_format == 'oneHot':
        idx = jnp.argmin(d, axis=2)
        return jax.nn.one_hot(idx, nk, dtype=jnp.int32)
    elif out_format == 'int':
        return jnp.argmin(d, axis=2).astype(jnp.int32)
    return jax.nn.softmax(-d, axis=2)


if __name__ == "__main__":
    B, S, Din, H, NK = 2, 8, 16, 32, 16

    key = jax.random.PRNGKey(0)
    k_data, k_w, k_b, k_mu = jax.random.split(key, 4)
    data = jax.random.normal(k_data, (B, S, Din), dtype=jnp.float32)
    w = jax.random.normal(k_w, (Din, H), dtype=jnp.float32) * 0.1
    b = jax.random.normal(k_b, (1, H), dtype=jnp.float32) * 0.1
    centers = jax.random.normal(k_mu, (NK, H), dtype=jnp.float32) * 0.5

    ok = True
    for fmt in ('oneHot', 'int', 'softmax'):
        out = jax.block_until_ready(model_cluster_combined(data, w, b, centers, NK, fmt))
        ref = _reference(data, w, b, centers, NK, fmt)
        if fmt == 'softmax':
            ok &= bool(jnp.allclose(out, ref, atol=1e-2, rtol=1e-2))
        else:
            ok &= bool(jnp.array_equal(out, ref))

    # bf16 MXU operands + bf16 exp + bf16 output (v6e/v7x path), f32 accumulation.
    out_bf16 = jax.block_until_ready(
        model_cluster_combined(data, w, b, centers, NK, 'softmax',
                               compute_dtype=jnp.bfloat16,
                               softmax_out_dtype=jnp.bfloat16))
    ref_sm = _reference(data, w, b, centers, NK, 'softmax')
    ok &= bool(jnp.allclose(out_bf16.astype(jnp.float32), ref_sm, atol=5e-2, rtol=5e-2))

    print("KERNEL_OK" if ok else "KERNEL_MISMATCH")
</pallas_src>

<mosaic_0001>
module attributes {stable_mosaic.version = 11 : i64} {
  func.func @_onehot_kernel(%arg0: i32, %arg1: memref<16x16xf32, #tpu.memory_space<vmem>>, %arg2: memref<16x128xf32, #tpu.memory_space<vmem>>, %arg3: memref<1x128xf32, #tpu.memory_space<vmem>>, %arg4: memref<16x128xi8, #tpu.memory_space<vmem>>) attributes {dimension_semantics = [#tpu.dimension_semantics<parallel>], iteration_bounds = array<i64: 1>, scalar_prefetch = 0 : i64, scratch_operands = 0 : i64, tpu.core_type = #tpu.core_type<tc>, window_params = [{transform_indices = @transform_0, window_bounds = array<i64: 16, 16>}, {pipeline_mode = #tpu.pipeline_mode<synchronous>, transform_indices = @transform_1, window_bounds = array<i64: 16, 128>}, {pipeline_mode = #tpu.pipeline_mode<synchronous>, transform_indices = @transform_2, window_bounds = array<i64: 1, 128>}, {transform_indices = @transform_3, window_bounds = array<i64: 16, 128>}]} {
    %c0 = arith.constant 0 : index
    %c0_0 = arith.constant 0 : index
    %0 = vector.load %arg1[%c0, %c0_0] : memref<16x16xf32, #tpu.memory_space<vmem>>, vector<16x16xf32>
    %c0_1 = arith.constant 0 : index
    %c0_2 = arith.constant 0 : index
    %1 = vector.load %arg2[%c0_1, %c0_2] : memref<16x128xf32, #tpu.memory_space<vmem>>, vector<16x128xf32>
    %cst = arith.constant dense<0.000000e+00> : vector<16x128xf32>
    %2 = tpu.matmul %0, %1, %cst {dimension_numbers = #tpu.dot_dimension_numbers<[1], [0], [0], [1], [0, 0, 1, 1], [], []>} : vector<16x16xf32>, vector<16x128xf32>, vector<16x128xf32> -> vector<16x128xf32>
    %c0_3 = arith.constant 0 : index
    %c0_4 = arith.constant 0 : index
    %3 = vector.load %arg3[%c0_3, %c0_4] : memref<1x128xf32, #tpu.memory_space<vmem>>, vector<1x128xf32>
    %4 = vector.broadcast %3 : vector<1x128xf32> to vector<16x128xf32>
    %5 = arith.addf %2, %4 : vector<16x128xf32>
    %cst_5 = arith.constant dense<0x7F800000> : vector<16xf32>
    %6 = vector.multi_reduction <minimumf>, %5, %cst_5 [1] : vector<16x128xf32> to vector<16xf32>
    %7 = vector.shape_cast %6 : vector<16xf32> to vector<16x1xf32>
    %8 = tpu.iota {dimensions = array<i32: 1>} : vector<16x128xi32>
    %9 = vector.broadcast %7 : vector<16x1xf32> to vector<16x128xf32>
    %10 = arith.cmpf oeq, %5, %9 : vector<16x128xf32>
    %c128_i32 = arith.constant 128 : i32
    %11 = vector.broadcast %c128_i32 : i32 to vector<16x128xi32>
    %12 = arith.select %10, %8, %11 : vector<16x128xi1>, vector<16x128xi32>
    %cst_6 = arith.constant dense<2147483647> : vector<16xi32>
    %13 = vector.multi_reduction <minsi>, %12, %cst_6 [1] : vector<16x128xi32> to vector<16xi32>
    %14 = vector.shape_cast %13 : vector<16xi32> to vector<16x1xi32>
    %15 = vector.broadcast %14 : vector<16x1xi32> to vector<16x128xi32>
    %16 = arith.cmpi eq, %8, %15 : vector<16x128xi32>
    %17 = arith.extui %16 : vector<16x128xi1> to vector<16x128xi8>
    %c0_7 = arith.constant 0 : index
    %c0_8 = arith.constant 0 : index
    %18 = vector.load %arg4[%c0_7, %c0_8] : memref<16x128xi8, #tpu.memory_space<vmem>>, vector<16x128xi8>
    tpu.vector_store %arg4[%c0_7, %c0_8], %17 {strides = array<i32>} : memref<16x128xi8, #tpu.memory_space<vmem>>, vector<16x128xi8>,
    return
  }
  func.func @transform_0(%arg0: i32) -> (i32, i32) {
    %c0_i32 = arith.constant 0 : i32
    %c0_i32_0 = arith.constant 0 : i32
    return %arg0, %c0_i32 : i32, i32
  }
  func.func @transform_1(%arg0: i32) -> (i32, i32) {
    %c0_i32 = arith.constant 0 : i32
    %c0_i32_0 = arith.constant 0 : i32
    %c0_i32_1 = arith.constant 0 : i32
    return %c0_i32, %c0_i32_0 : i32, i32
  }
  func.func @transform_2(%arg0: i32) -> (i32, i32) {
    %c0_i32 = arith.constant 0 : i32
    %c0_i32_0 = arith.constant 0 : i32
    %c0_i32_1 = arith.constant 0 : i32
    return %c0_i32, %c0_i32_0 : i32, i32
  }
  func.func @transform_3(%arg0: i32) -> (i32, i32) {
    %c0_i32 = arith.constant 0 : i32
    %c0_i32_0 = arith.constant 0 : i32
    return %arg0, %c0_i32 : i32, i32
  }
}

</mosaic_0001>

<llo_original>
// kernel: tpu_custom_call.1
$region0: #{tpu_custom_call.1}
  #allocation0 [shape = 'u32[]', space=smem, size = 0x4, offset = 0x4, fixed_abs, tag = 'smem constant byte address 0x4 - core index']
  #allocation1 [shape = 'u32[144,128]{1,0:T(1,128)}', space=vmem, size = 0x12000, scoped, tag = 'internal scratch']
  %s0 = inlined_call_operand.hbm [shape: f32[16,16], index: 0, kind: input, shape index: {}]
  %s1 = inlined_call_operand.hbm [shape: f32[16,128], index: 1, kind: input, shape index: {}]
  %s2 = inlined_call_operand.vmem [shape: f32[1,128], index: 2, kind: input, shape index: {}]
  %s3 = inlined_call_operand.hbm [shape: s8[16,128], index: 3, kind: output, shape index: {}]
  %s4 = sld [smem:[#allocation0]]
  $region30: #{tpu_custom_call.1} parent=0
    _
  %s6 = ssub.s32 1, %s4
  %s7 = scalar_select 0, %s6, %s4
  $region1: #{tpu_custom_call.1} parent=0
    #allocation2 [shape = 'u8[8192]{0}', space=vmem, size = 0x2000, scoped, tag = 'input window, operand 0, single buffered']
    #allocation3 [shape = 's32[1]{0}', space=sflag, size = 0x4, scoped, tag = 'scoped memory for tpu_custom_call.1']
    #allocation4 [shape = 's32[1]{0}', space=sflag, size = 0x4, scoped, tag = 'scoped memory for tpu_custom_call.1']
    #allocation5 [shape = 'u8[8192]{0}', space=vmem, size = 0x2000, scoped, tag = 'input window, operand 1, single buffered']
    #allocation6 [shape = 's32[1]{0}', space=sflag, size = 0x4, scoped, tag = 'scoped memory for tpu_custom_call.1']
    #allocation7 [shape = 'u8[2048]{0}', space=vmem, size = 0x800, scoped, tag = 'output window, operand 0, single buffered']
    %8 = vsyncpa [#allocation3], 0
    %9 = vsyncpa [#allocation6], 0
    %10 = vsyncpa [#allocation4], 0
    // Predicated region
    $region2: #{tpu_custom_call.1} parent=1 // pred_check
      _
    $region3: #{tpu_custom_call.1} parent=1 // pred_check_branch
      %12 = sbr.rel (0) target = $region5
    $region4: #{tpu_custom_call.1} parent=1 // pred_region
      %s14 = ssub.s32 256, 256
      %15 = vsyncadd [#allocation3], %s14
      %s16 = sshll.u32 [#allocation2], 4
      %s17 = int_to_ptr.vmem [resolvable:$true] %s16
      %22 = dma.hbm_to_vmem [thread:$0]  %s0, 256, %s17, [#allocation3], 128, 128, 8
    $region5: #{tpu_custom_call.1} parent=1 // pred_fallthru
      _
    // Predicated region
    $region6: #{tpu_custom_call.1} parent=1 // pred_check
      _
    $region7: #{tpu_custom_call.1} parent=1 // pred_check_branch
      %24 = sbr.rel (0) target = $region9
    $region8: #{tpu_custom_call.1} parent=1 // pred_region
      %s26 = ssub.s32 256, 256
      %27 = vsyncadd [#allocation6], %s26
      %s28 = sshll.u32 [#allocation5], 4
      %s29 = int_to_ptr.vmem [resolvable:$true] %s28
      %34 = dma.hbm_to_vmem [thread:$0]  %s1, 256, %s29, [#allocation6], 128, 128, 8
    $region9: #{tpu_custom_call.1} parent=1 // pred_fallthru
      _
    // Predicated region
    $region10: #{tpu_custom_call.1} parent=1 // pred_check
      _
    $region11: #{tpu_custom_call.1} parent=1 // pred_check_branch
      %36 = sbr.rel (0) target = $region13
    $region12: #{tpu_custom_call.1} parent=1 // pred_region
      _
    $region13: #{tpu_custom_call.1} parent=1 // pred_fallthru
      _
    // Predicated region
    $region14: #{tpu_custom_call.1} parent=1 // pred_check
      _
    $region15: #{tpu_custom_call.1} parent=1 // pred_check_branch
      %38 = sbr.rel (0) target = $region17
    $region16: #{tpu_custom_call.1} parent=1 // pred_region
      %39 = dma.done [#allocation3], 256
    $region17: #{tpu_custom_call.1} parent=1 // pred_fallthru
      _
    // Predicated region
    $region18: #{tpu_custom_call.1} parent=1 // pred_check
      _
    $region19: #{tpu_custom_call.1} parent=1 // pred_check_branch
      %41 = sbr.rel (0) target = $region21
    $region20: #{tpu_custom_call.1} parent=1 // pred_region
      %42 = dma.done [#allocation6], 256
    $region21: #{tpu_custom_call.1} parent=1 // pred_fallthru
      _
    %v45 = vld [vmem:[#allocation2] sm:$0xff]
    %v46 = vld [vmem:[#allocation2 + $0x8] sm:$0xff]
    %v47 = vld [vmem:[#allocation5] sm:$0xff]
    %v48 = vld [vmem:[#allocation5 + $0x8] sm:$0xff]
    %v49 = vld [vmem:[%s2] sm:$0x1]
    %v51 = vlaneseq
    %v52 = vshrl.u32 %v51, 7
    %v53 = vsub.s32 0, %v52
    %v54 = vrot.slane %v49, %v53
    %vm56 = vcmask 130048
    %v58 = vsel %vm56, %v45, 0
    %v61 = vsel %vm56, %v46, 0
    %63 = vmatprep.subr.mxu0 0.0
    %64 = vmatpush1.msra.mxu0 %v47
    %65 = vmatprep.subr.mxu0 0.0
    %66 = vmatpush1.msra.mxu0 %v48
    %67 = vmatprep.subr.mxu0 0.0
    %68 = vmatpush1.msra.mxu0 0.0
    %69 = vmatprep.subr.mxu0 0.0
    %70 = vmatpush1.msra.mxu0 0.0
    %71 = vmatprep.subr.mxu0 0.0
    %72 = vmatpush1.msra.mxu0 0.0
    %73 = vmatprep.subr.mxu0 0.0
    %74 = vmatpush1.msra.mxu0 0.0
    %75 = vmatprep.subr.mxu0 0.0
    %76 = vmatpush1.msra.mxu0 0.0
    %77 = vmatprep.subr.mxu0 0.0
    %78 = vmatpush1.msra.mxu0 0.0
    %79 = vmatprep.subr.mxu0 0.0
    %80 = vmatpush1.msra.mxu0 0.0
    %81 = vmatprep.subr.mxu0 0.0
    %82 = vmatpush1.msra.mxu0 0.0
    %83 = vmatprep.subr.mxu0 0.0
    %84 = vmatpush1.msra.mxu0 0.0
    %85 = vmatprep.subr.mxu0 0.0
    %86 = vmatpush1.msra.mxu0 0.0
    %87 = vmatprep.subr.mxu0 0.0
    %88 = vmatpush1.msra.mxu0 0.0
    %89 = vmatprep.subr.mxu0 0.0
    %90 = vmatpush1.msra.mxu0 0.0
    %91 = vmatprep.subr.mxu0 0.0
    %92 = vmatpush1.msra.mxu0 0.0
    %93 = vmatprep.subr.mxu0 0.0
    %94 = vmatpush1.msra.mxu0 0.0
    %95 = vmatprep.subr.mxu0 0.0
    %96 = vmatpush1.msra.mxu0 0.0
    %97 = vmatprep.subr.mxu0 0.0
    %98 = vmatpush1.msra.mxu0 0.0
    %99 = vmatprep.subr.mxu0 0.0
    %100 = vmatpush1.msra.mxu0 0.0
    %101 = vmatprep.subr.mxu0 0.0
    %102 = vmatpush1.msra.mxu0 0.0
    %103 = vmatprep.subr.mxu0 0.0
    %104 = vmatpush1.msra.mxu0 0.0
    %105 = vmatprep.subr.mxu0 0.0
    %106 = vmatpush1.msra.mxu0 0.0
    %107 = vmatprep.subr.mxu0 0.0
    %108 = vmatpush1.msra.mxu0 0.0
    %109 = vmatprep.subr.mxu0 0.0
    %110 = vmatpush1.msra.mxu0 0.0
    %111 = vmatprep.subr.mxu0 0.0
    %112 = vmatpush1.msra.mxu0 0.0
    %113 = vmatprep.subr.mxu0 0.0
    %114 = vmatpush1.msra.mxu0 0.0
    %115 = vmatprep.subr.mxu0 0.0
    %116 = vmatpush1.msra.mxu0 0.0
    %117 = vmatprep.subr.mxu0 0.0
    %118 = vmatpush1.msra.mxu0 0.0
    %119 = vmatprep.subr.mxu0 0.0
    %120 = vmatpush1.msra.mxu0 0.0
    %121 = vmatprep.subr.mxu0 0.0
    %122 = vmatpush1.msra.mxu0 0.0
    %123 = vmatprep.subr.mxu0 0.0
    %124 = vmatpush1.msra.mxu0 0.0
    %125 = vmatprep.subr.mxu0 0.0
    %126 = vmatpush1.msra.mxu0 0.0
    %127 = vmatprep.mubr.f32.mxu0 0.0
    %128 = vmatmul.mubr.f32.gmra.mrb[0].mxu0 %v58
    %v129 = vpop.f32.mrb[0].mxu0
    %v130 = vadd.f32 %v54, %v129
    %v131 = vpop.f32.mrb[0].mxu0
    %132 = vmatprep.mubr.f32.mxu0 0.0
    %133 = vmatmul.mubr.f32.gmra.mrb[0].mxu0 %v61
    %v134 = vpop.f32.mrb[0].mxu0
    %v135 = vadd.f32 %v54, %v134
    %v136 = vpop.f32.mrb[0].mxu0
    %137 = vdwg.mxu0
    %138 = vmin.xlane.f32.xlu0 %v130
    %v139 = vpop.xlane.xlu0 %138
    %140 = vmin.xlane.f32.xlu0 %v135
    %v141 = vpop.xlane.xlu0 %140
    %v142 = vlaneseq
    %v143 = vand.u32 %v142, 127
    %vm144 = vcmp.eq.f32.partialorder %v130, %v139
    %vm145 = vcmp.eq.f32.partialorder %v135, %v141
    %v146 = vsel %vm144, %v143, 128
    %v147 = vsel %vm145, %v143, 128
    %v148 = vand.u32 %v146, 65535
    %v149 = vshra.s32 %v146, 16
    %v150 = vcvt.s32.f32 %v148
    %v151 = vcvt.s32.f32 %v149
    %152 = vmin.xlane.f32.xlu0 %v151
    %v153 = vpop.xlane.xlu0 %152
    %vm154 = vcmp.eq.f32.partialorder %v151, %v153
    %v155 = vsel %vm154, %v150, inf
    %156 = vmin.xlane.f32.xlu0 %v155
    %v157 = vpop.xlane.xlu0 %156
    %v158 = vcvt.f32.s32 %v157
    %v159 = vcvt.f32.s32 %v153
    %v160 = vshll.u32 %v159, 16
    %v161 = vadd.s32 %v160, %v158
    %v162 = vand.u32 %v147, 65535
    %v163 = vshra.s32 %v147, 16
    %v164 = vcvt.s32.f32 %v162
    %v165 = vcvt.s32.f32 %v163
    %166 = vmin.xlane.f32.xlu0 %v165
    %v167 = vpop.xlane.xlu0 %166
    %vm168 = vcmp.eq.f32.partialorder %v165, %v167
    %v169 = vsel %vm168, %v164, inf
    %170 = vmin.xlane.f32.xlu0 %v169
    %v171 = vpop.xlane.xlu0 %170
    %v172 = vcvt.f32.s32 %v171
    %v173 = vcvt.f32.s32 %v167
    %v174 = vshll.u32 %v173, 16
    %v175 = vadd.s32 %v174, %v172
    %vm176 = vcmp.eq.s32.totalorder %v143, %v161
    %vm177 = vcmp.eq.s32.totalorder %v143, %v175
    %vm178 = vmpackc.low %vm177, %vm176
    %vm179 = vmpackc.even %vm178, %vm178
    %v180 = vsel %vm179, 16843009, 0
    %v181 = vunpack.c.0.s8 %v180
    %v182 = vunpack.c.1.s8 %v180
    %v183 = vpack.c.b16 %v181, %v181
    %v184 = vpack.c.b8 %v183, %v183
    %v185 = vpack.c.b16 %v182, %v182
    %v186 = vpack.c.b8 %v185, %v185
    %187 = vst [vmem:[#allocation7] sm:$0x3] %v184
    %188 = vst [vmem:[#allocation7 + $0x2] sm:$0x3] %v186
    // Predicated region
    $region22: #{tpu_custom_call.1} parent=1 // pred_check
      _
    $region23: #{tpu_custom_call.1} parent=1 // pred_check_branch
      %190 = sbr.rel (0) target = $region25
    $region24: #{tpu_custom_call.1} parent=1 // pred_region
      %s192 = ssub.s32 64, 64
      %193 = vsyncadd [#allocation4], %s192
      %s194 = sshll.u32 [#allocation7], 4
      %s195 = int_to_ptr.vmem [resolvable:$true] %s194
      %200 = dma.vmem_to_hbm [thread:$0]  %s195, 64, %s3, [#allocation4], 32, 32, 2
    $region25: #{tpu_custom_call.1} parent=1 // pred_fallthru
      _
    // Predicated region
    $region26: #{tpu_custom_call.1} parent=1 // pred_check
      _
    $region27: #{tpu_custom_call.1} parent=1 // pred_check_branch
      %202 = sbr.rel (0) target = $region29
    $region28: #{tpu_custom_call.1} parent=1 // pred_region
      %203 = dma.done [#allocation4], 64
    $region29: #{tpu_custom_call.1} parent=1 // pred_fallthru
      _
    %204 = vsyncpa [#allocation3], 1
    %205 = vsyncpa [#allocation6], 1
    %206 = vsyncpa [#allocation4], 1

</llo_original>
